<compile_context>
chip_gen: v5e
topology: v5e:2x2
jax: 0.10.0
libtpu: 0.0.40
codegen_flags: <defaults>
</compile_context>

<pallas_src>
import functools

import numpy as np
import jax
import jax.numpy as jnp
from jax import lax
from jax.experimental import pallas as pl
from jax.experimental.pallas import tpu as pltpu  # noqa: F401  (not needed at this size)

EMBED = 32                  # embed_size
HEADS = 4                   # heads
HEAD_DIM = EMBED // HEADS   # head_dim
FF = 4 * EMBED              # forward_expansion * embed_size
LN_EPS = 1e-5               # torch.nn.LayerNorm default eps


# ---------------------------------------------------------------------------
# Single fused kernel: attention + (reshape+fc_out) + LN1 + FFN + LN2
# ---------------------------------------------------------------------------
def _decoder_block_kernel(x_ref, wbig_ref, seg_ref, gnum_ref, gden_ref,
                          g_ref, mask_ref, wext_ref, w1_ref, b1_ref, w2_ref,
                          vec_ref, out_ref, *, heads):
    H = heads
    E = x_ref.shape[1]
    E2 = H * E                      # lane width of the expanded score layout

    x = x_ref[...]                                              # (R, E) f32

    # ---- fused QKV projection, already replicated/tiled to the 128-lane
    #      "segment (i*H+j)" layout; 1/sqrt(E) folded into the Q columns ----
    qkv = jnp.dot(x, wbig_ref[...], preferred_element_type=jnp.float32)  # (R, 3*E2)
    q_rep = qkv[:, 0:E2]            # segment (i*H+j) holds q_i / sqrt(E)
    k_til = qkv[:, E2:2 * E2]       # segment (i*H+j) holds k_j
    v_til = qkv[:, 2 * E2:3 * E2]   # segment (i*H+j) holds v_j

    # ---- lane-dense head-mixing softmax (per (batch, seq) position) --------
    seg = seg_ref[...].astype(jnp.float32)          # block-ones: segment sum + bcast
    s_bcast = jnp.dot(q_rep * k_til, seg,
                      preferred_element_type=jnp.float32)       # (R, E2)
    rmax = jnp.max(s_bcast, axis=-1, keepdims=True)             # one XLU reduce/row
    p = jnp.exp(s_bcast - rmax)                                 # unnormalized probs

    numer = jnp.dot(p * v_til, gnum_ref[...].astype(jnp.float32),
                    preferred_element_type=jnp.float32)         # (R, E)  sum_j p_ij v_j
    denom = jnp.dot(p, gden_ref[...].astype(jnp.float32),
                    preferred_element_type=jnp.float32)         # (R, E)  sum_j p_ij
    attn = numer * pl.reciprocal(denom, approx=True)            # o_i(n,s), heads on lanes

    # ---- torch's raw (N,H,L,D)->(N,L,E) reshape + fc_out, folded into H
    #      precomputed (row-gather, head-mask, weight-block) terms ------------
    vecs = vec_ref[...]             # rows: bfc, ln1_g, ln1_b, b2, ln2_g, ln2_b
    a = vecs[0:1, :]                # bfc (broadcasts on first add)
    for j in range(H):              # static unroll; all operands are constants
        gathered = jnp.dot(g_ref[j].astype(jnp.float32), attn,
                           preferred_element_type=jnp.float32)  # (R, E) row gather
        a = a + jnp.dot(gathered * mask_ref[j].astype(jnp.float32),
                        wext_ref[j], preferred_element_type=jnp.float32)

    def layer_norm(h, gamma, beta):
        mu = jnp.mean(h, axis=-1, keepdims=True)
        c = h - mu
        var = jnp.mean(c * c, axis=-1, keepdims=True)
        return c * lax.rsqrt(var + LN_EPS) * gamma + beta       # EUP rsqrt

    n1 = layer_norm(a + x, vecs[1:2, :], vecs[2:3, :])

    # ---- feed forward (lane-dense (R, 128) hidden) + residual + LayerNorm2 --
    hid = jnp.dot(n1, w1_ref[...],
                  preferred_element_type=jnp.float32) + b1_ref[...]
    hid = jnp.maximum(hid, 0.0)
    ff = jnp.dot(hid, w2_ref[...],
                 preferred_element_type=jnp.float32) + vecs[3:4, :]
    out_ref[...] = layer_norm(ff + n1, vecs[4:5, :], vecs[5:6, :])


# ---------------------------------------------------------------------------
# One-time parameter packing (outside the jitted forward)
# ---------------------------------------------------------------------------
def pack_params(params):
    """Build every parameter-derived constant once: the fused lane-expanded
    QKV projection (scale folded in), the segment-sum / softmax-group
    operators, the per-block fc_out weights with the torch-reshape head
    selection folded in, transposed FFN weights, and one (6, E) vector slab.
    0/1 structural matrices are stored as bfloat16 (lossless)."""
    H, D, E = HEADS, HEAD_DIM, EMBED
    E2 = H * E
    scale = 1.0 / (E ** 0.5)

    # per-head block-diagonal projections (all heads share the same D x D weight)
    eye_h = jnp.eye(H, dtype=jnp.float32)
    qbd = jnp.kron(eye_h, params["wq"].T) * scale     # (E, E)
    kbd = jnp.kron(eye_h, params["wk"].T)
    vbd = jnp.kron(eye_h, params["wv"].T)

    # replication operators: q_rep segment (i*H+j) <- q_i ;  k/v segment <- k_j / v_j
    rep_q = np.zeros((E, E2), np.float32)
    rep_k = np.zeros((E, E2), np.float32)
    seg = np.zeros((E2, E2), np.float32)     # per-segment sum, broadcast back over D
    gnum = np.zeros((E2, E), np.float32)     # sum over key-head j  -> head i block
    gden = np.zeros((E2, E), np.float32)     # softmax denominator -> head i block
    eye_d = np.eye(D, dtype=np.float32)
    for i in range(H):
        for j in range(H):
            m = i * H + j
            rep_q[i * D:(i + 1) * D, m * D:(m + 1) * D] = eye_d
            rep_k[j * D:(j + 1) * D, m * D:(m + 1) * D] = eye_d
            seg[m * D:(m + 1) * D, m * D:(m + 1) * D] = 1.0
            gnum[m * D:(m + 1) * D, i * D:(i + 1) * D] = eye_d
            gden[m * D:(m + 1) * D, i * D:(i + 1) * D] = 1.0 / D

    wbig = jnp.concatenate([qbd @ jnp.asarray(rep_q),
                            kbd @ jnp.asarray(rep_k),
                            vbd @ jnp.asarray(rep_k)], axis=1)   # (E, 3*E2)

    # fc_out weight, split per torch-reshape output block j and tiled over the
    # source-head axis: wext[j][h*D+d, c] = wfc[c, j*D+d]  for every h.
    wfc = params["wfc"]
    wext = jnp.stack([jnp.tile(wfc[:, j * D:(j + 1) * D].T, (H, 1))
                      for j in range(H)])                        # (H, E, E)

    return dict(
        wbig=wbig,                                               # f32 (E, 3*E2)
        segones=jnp.asarray(seg, jnp.bfloat16),                  # lossless 0/1
        gnum=jnp.asarray(gnum, jnp.bfloat16),
        gden=jnp.asarray(gden, jnp.bfloat16),
        wext=wext,                                               # f32 (H, E, E)
        w1_t=params["w1"].T,                                     # (E, FF)
        w2_t=params["w2"].T,                                     # (FF, E)
        b1=params["b1"][None, :],                                # (1, FF)
        vecs=jnp.stack([params["bfc"], params["ln1_g"], params["ln1_b"],
                        params["b2"], params["ln2_g"], params["ln2_b"]]),  # (6, E)
    )


# ---------------------------------------------------------------------------
# Forward
# ---------------------------------------------------------------------------
@jax.jit
def transformer_decoder_block(x, packed):
    N, L, E = x.shape
    assert E == EMBED
    H, D = HEADS, HEAD_DIM
    R = N * L
    E2 = H * E
    ffdim = packed["w1_t"].shape[1]

    # Row-gather + head-selection constants realizing torch's raw
    # (N, H, L, D) -> (N, L, E) reshape, folded into the fc_out step.
    # Built once at trace time (compile-time constants), never in-kernel.
    g = np.zeros((H, R, R), np.float32)
    mask = np.zeros((H, R, E), np.float32)
    for j in range(H):
        for n in range(N):
            for l in range(L):
                t = n * L + l
                hh = (l * H + j) // L         # source head for (l, block j)
                ss = (l * H + j) % L          # source sequence position
                g[j, t, n * L + ss] = 1.0
                mask[j, t, hh * D:(hh + 1) * D] = 1.0
    g = jnp.asarray(g, jnp.bfloat16)
    mask = jnp.asarray(mask, jnp.bfloat16)

    flops = (2 * R * E * (3 * E2) + 2 * R * E2 * E2 + 2 * (2 * R * E2 * E)
             + H * (2 * R * R * E + 2 * R * E * E)
             + 2 * R * E * ffdim + 2 * R * ffdim * E)
    transcendentals = R * E2 + R * E + 2 * R
    bytes_accessed = (4 * (x.size + packed["wbig"].size + packed["wext"].size
                           + packed["w1_t"].size + packed["w2_t"].size
                           + packed["vecs"].size + packed["b1"].size + R * E)
                      + 2 * (packed["segones"].size + packed["gnum"].size
                             + packed["gden"].size + g.size + mask.size))

    kernel = functools.partial(_decoder_block_kernel, heads=H)
    out_flat = pl.pallas_call(
        kernel,
        out_shape=jax.ShapeDtypeStruct((R, E), jnp.float32),
        cost_estimate=pl.CostEstimate(flops=flops,
                                      transcendentals=transcendentals,
                                      bytes_accessed=bytes_accessed),
        # Single fused invocation: everything fits in VMEM on every TPU
        # generation, so no grid / no pipelining needed at this size.
    )(x.reshape(R, E), packed["wbig"], packed["segones"], packed["gnum"],
      packed["gden"], g, mask, packed["wext"], packed["w1_t"], packed["b1"],
      packed["w2_t"], packed["vecs"])
    return out_flat.reshape(N, L, E)


# ---------------------------------------------------------------------------
# Pure-JAX reference (mirrors the PyTorch code line by line)
# ---------------------------------------------------------------------------
def reference_forward(x, params):
    N, L, E = x.shape
    H, D = HEADS, HEAD_DIM
    xh = x.reshape(N, L, H, D).transpose(0, 2, 1, 3)     # b h n d
    v = xh @ params["wv"].T
    k = xh @ params["wk"].T
    q = xh @ params["wq"].T
    att = jnp.einsum("nqhd,nkhd->nhqk", q, k)
    att = jax.nn.softmax(att / (E ** 0.5), axis=3)
    out = jnp.einsum("nhql,nlhd->nqhd", att, v).reshape(N, L, H * D)
    out = out @ params["wfc"].T + params["bfc"]

    def ln(h, g, b):
        mu = jnp.mean(h, axis=-1, keepdims=True)
        var = jnp.mean((h - mu) ** 2, axis=-1, keepdims=True)
        return (h - mu) / jnp.sqrt(var + LN_EPS) * g + b

    h1 = ln(out + x, params["ln1_g"], params["ln1_b"])
    ff = (jnp.maximum(h1 @ params["w1"].T + params["b1"], 0.0)
          @ params["w2"].T + params["b2"])
    return ln(ff + h1, params["ln2_g"], params["ln2_b"])


if __name__ == "__main__":
    N, L = 2, 8
    E, D, Fh = EMBED, HEAD_DIM, FF

    key = jax.random.PRNGKey(0)
    ks = jax.random.split(key, 12)

    def uni(k, shape, fan_in):
        bound = 1.0 / (fan_in ** 0.5)
        return jax.random.uniform(k, shape, jnp.float32, -bound, bound)

    params = dict(
        wq=uni(ks[0], (D, D), D),          # nn.Linear(head_dim, head_dim, bias=False)
        wk=uni(ks[1], (D, D), D),
        wv=uni(ks[2], (D, D), D),
        wfc=uni(ks[3], (E, E), E),         # fc_out
        bfc=uni(ks[4], (E,), E),
        ln1_g=jnp.ones((E,), jnp.float32),
        ln1_b=jnp.zeros((E,), jnp.float32),
        w1=uni(ks[5], (Fh, E), E),         # Linear(E, 4E)
        b1=uni(ks[6], (Fh,), E),
        w2=uni(ks[7], (E, Fh), Fh),        # Linear(4E, E)
        b2=uni(ks[8], (E,), Fh),
        ln2_g=jnp.ones((E,), jnp.float32),
        ln2_b=jnp.zeros((E,), jnp.float32),
    )

    packed = pack_params(params)           # one-time, outside the jitted forward
    x = jax.random.normal(ks[9], (N, L, E), jnp.float32)

    out = jax.block_until_ready(transformer_decoder_block(x, packed))
    ref = jax.block_until_ready(reference_forward(x, params))

    assert out.shape == (N, L, E)
    max_err = float(jnp.max(jnp.abs(out - ref)))
    assert max_err < 3e-3, f"mismatch vs reference: {max_err}"
    print("KERNEL_OK")
</pallas_src>

<mosaic_0001>
module attributes {stable_mosaic.version = 11 : i64} {
  func.func @_decoder_block_kernel(%arg0: memref<16x32xf32, #tpu.memory_space<vmem>>, %arg1: memref<32x384xf32, #tpu.memory_space<vmem>>, %arg2: memref<128x128xbf16, #tpu.memory_space<vmem>>, %arg3: memref<128x32xbf16, #tpu.memory_space<vmem>>, %arg4: memref<128x32xbf16, #tpu.memory_space<vmem>>, %arg5: memref<4x16x16xbf16, #tpu.memory_space<vmem>>, %arg6: memref<4x16x32xbf16, #tpu.memory_space<vmem>>, %arg7: memref<4x32x32xf32, #tpu.memory_space<vmem>>, %arg8: memref<32x128xf32, #tpu.memory_space<vmem>>, %arg9: memref<1x128xf32, #tpu.memory_space<vmem>>, %arg10: memref<128x32xf32, #tpu.memory_space<vmem>>, %arg11: memref<6x32xf32, #tpu.memory_space<vmem>>, %arg12: memref<16x32xf32, #tpu.memory_space<vmem>>) attributes {dimension_semantics = [], scalar_prefetch = 0 : i64, scratch_operands = 0 : i64, tpu.core_type = #tpu.core_type<tc>} {
    %c0 = arith.constant 0 : index
    %c0_0 = arith.constant 0 : index
    %0 = vector.load %arg0[%c0, %c0_0] : memref<16x32xf32, #tpu.memory_space<vmem>>, vector<16x32xf32>
    %c0_1 = arith.constant 0 : index
    %c0_2 = arith.constant 0 : index
    %1 = vector.load %arg1[%c0_1, %c0_2] : memref<32x384xf32, #tpu.memory_space<vmem>>, vector<32x384xf32>
    %cst = arith.constant dense<0.000000e+00> : vector<16x384xf32>
    %2 = tpu.matmul %0, %1, %cst {dimension_numbers = #tpu.dot_dimension_numbers<[1], [0], [0], [1], [0, 0, 1, 1], [], []>} : vector<16x32xf32>, vector<32x384xf32>, vector<16x384xf32> -> vector<16x384xf32>
    %3 = vector.extract_strided_slice %2 {offsets = [0, 0], sizes = [16, 128], strides = [1, 1]} : vector<16x384xf32> to vector<16x128xf32>
    %4 = vector.extract_strided_slice %2 {offsets = [0, 128], sizes = [16, 128], strides = [1, 1]} : vector<16x384xf32> to vector<16x128xf32>
    %5 = vector.extract_strided_slice %2 {offsets = [0, 256], sizes = [16, 128], strides = [1, 1]} : vector<16x384xf32> to vector<16x128xf32>
    %c0_3 = arith.constant 0 : index
    %c0_4 = arith.constant 0 : index
    %6 = vector.load %arg2[%c0_3, %c0_4] : memref<128x128xbf16, #tpu.memory_space<vmem>>, vector<128x128xbf16>
    %7 = arith.extf %6 : vector<128x128xbf16> to vector<128x128xf32>
    %8 = arith.mulf %3, %4 : vector<16x128xf32>
    %cst_5 = arith.constant dense<0.000000e+00> : vector<16x128xf32>
    %9 = tpu.matmul %8, %7, %cst_5 {dimension_numbers = #tpu.dot_dimension_numbers<[1], [0], [0], [1], [0, 0, 1, 1], [], []>} : vector<16x128xf32>, vector<128x128xf32>, vector<16x128xf32> -> vector<16x128xf32>
    %cst_6 = arith.constant dense<0xFF800000> : vector<16xf32>
    %10 = vector.multi_reduction <maximumf>, %9, %cst_6 [1] : vector<16x128xf32> to vector<16xf32>
    %11 = vector.shape_cast %10 : vector<16xf32> to vector<16x1xf32>
    %12 = vector.broadcast %11 : vector<16x1xf32> to vector<16x128xf32>
    %13 = arith.subf %9, %12 : vector<16x128xf32>
    %14 = math.exp %13 : vector<16x128xf32>
    %15 = arith.mulf %14, %5 : vector<16x128xf32>
    %c0_7 = arith.constant 0 : index
    %c0_8 = arith.constant 0 : index
    %16 = vector.load %arg3[%c0_7, %c0_8] : memref<128x32xbf16, #tpu.memory_space<vmem>>, vector<128x32xbf16>
    %17 = arith.extf %16 : vector<128x32xbf16> to vector<128x32xf32>
    %cst_9 = arith.constant dense<0.000000e+00> : vector<16x32xf32>
    %18 = tpu.matmul %15, %17, %cst_9 {dimension_numbers = #tpu.dot_dimension_numbers<[1], [0], [0], [1], [0, 0, 1, 1], [], []>} : vector<16x128xf32>, vector<128x32xf32>, vector<16x32xf32> -> vector<16x32xf32>
    %c0_10 = arith.constant 0 : index
    %c0_11 = arith.constant 0 : index
    %19 = vector.load %arg4[%c0_10, %c0_11] : memref<128x32xbf16, #tpu.memory_space<vmem>>, vector<128x32xbf16>
    %20 = arith.extf %19 : vector<128x32xbf16> to vector<128x32xf32>
    %cst_12 = arith.constant dense<0.000000e+00> : vector<16x32xf32>
    %21 = tpu.matmul %14, %20, %cst_12 {dimension_numbers = #tpu.dot_dimension_numbers<[1], [0], [0], [1], [0, 0, 1, 1], [], []>} : vector<16x128xf32>, vector<128x32xf32>, vector<16x32xf32> -> vector<16x32xf32>
    %22 = tpu.reciprocal %21 {approx = true} : vector<16x32xf32> -> vector<16x32xf32>
    %23 = arith.mulf %18, %22 : vector<16x32xf32>
    %c0_13 = arith.constant 0 : index
    %c0_14 = arith.constant 0 : index
    %24 = vector.load %arg11[%c0_13, %c0_14] : memref<6x32xf32, #tpu.memory_space<vmem>>, vector<6x32xf32>
    %25 = vector.extract_strided_slice %24 {offsets = [0, 0], sizes = [1, 32], strides = [1, 1]} : vector<6x32xf32> to vector<1x32xf32>
    %c0_15 = arith.constant 0 : index
    %c0_16 = arith.constant 0 : index
    %c0_17 = arith.constant 0 : index
    %26 = vector.load %arg5[%c0_15, %c0_16, %c0_17] : memref<4x16x16xbf16, #tpu.memory_space<vmem>>, vector<1x16x16xbf16>
    %27 = vector.shape_cast %26 : vector<1x16x16xbf16> to vector<16x16xbf16>
    %28 = arith.extf %27 : vector<16x16xbf16> to vector<16x16xf32>
    %cst_18 = arith.constant dense<0.000000e+00> : vector<16x32xf32>
    %29 = tpu.matmul %28, %23, %cst_18 {dimension_numbers = #tpu.dot_dimension_numbers<[1], [0], [0], [1], [0, 0, 1, 1], [], []>} : vector<16x16xf32>, vector<16x32xf32>, vector<16x32xf32> -> vector<16x32xf32>
    %c0_19 = arith.constant 0 : index
    %c0_20 = arith.constant 0 : index
    %c0_21 = arith.constant 0 : index
    %30 = vector.load %arg6[%c0_19, %c0_20, %c0_21] : memref<4x16x32xbf16, #tpu.memory_space<vmem>>, vector<1x16x32xbf16>
    %31 = vector.shape_cast %30 : vector<1x16x32xbf16> to vector<16x32xbf16>
    %32 = arith.extf %31 : vector<16x32xbf16> to vector<16x32xf32>
    %33 = arith.mulf %29, %32 : vector<16x32xf32>
    %c0_22 = arith.constant 0 : index
    %c0_23 = arith.constant 0 : index
    %c0_24 = arith.constant 0 : index
    %34 = vector.load %arg7[%c0_22, %c0_23, %c0_24] : memref<4x32x32xf32, #tpu.memory_space<vmem>>, vector<1x32x32xf32>
    %35 = vector.shape_cast %34 : vector<1x32x32xf32> to vector<32x32xf32>
    %cst_25 = arith.constant dense<0.000000e+00> : vector<16x32xf32>
    %36 = tpu.matmul %33, %35, %cst_25 {dimension_numbers = #tpu.dot_dimension_numbers<[1], [0], [0], [1], [0, 0, 1, 1], [], []>} : vector<16x32xf32>, vector<32x32xf32>, vector<16x32xf32> -> vector<16x32xf32>
    %37 = vector.broadcast %25 : vector<1x32xf32> to vector<16x32xf32>
    %38 = arith.addf %37, %36 : vector<16x32xf32>
    %c1 = arith.constant 1 : index
    %c0_26 = arith.constant 0 : index
    %c0_27 = arith.constant 0 : index
    %39 = vector.load %arg5[%c1, %c0_26, %c0_27] : memref<4x16x16xbf16, #tpu.memory_space<vmem>>, vector<1x16x16xbf16>
    %40 = vector.shape_cast %39 : vector<1x16x16xbf16> to vector<16x16xbf16>
    %41 = arith.extf %40 : vector<16x16xbf16> to vector<16x16xf32>
    %cst_28 = arith.constant dense<0.000000e+00> : vector<16x32xf32>
    %42 = tpu.matmul %41, %23, %cst_28 {dimension_numbers = #tpu.dot_dimension_numbers<[1], [0], [0], [1], [0, 0, 1, 1], [], []>} : vector<16x16xf32>, vector<16x32xf32>, vector<16x32xf32> -> vector<16x32xf32>
    %c1_29 = arith.constant 1 : index
    %c0_30 = arith.constant 0 : index
    %c0_31 = arith.constant 0 : index
    %43 = vector.load %arg6[%c1_29, %c0_30, %c0_31] : memref<4x16x32xbf16, #tpu.memory_space<vmem>>, vector<1x16x32xbf16>
    %44 = vector.shape_cast %43 : vector<1x16x32xbf16> to vector<16x32xbf16>
    %45 = arith.extf %44 : vector<16x32xbf16> to vector<16x32xf32>
    %46 = arith.mulf %42, %45 : vector<16x32xf32>
    %c1_32 = arith.constant 1 : index
    %c0_33 = arith.constant 0 : index
    %c0_34 = arith.constant 0 : index
    %47 = vector.load %arg7[%c1_32, %c0_33, %c0_34] : memref<4x32x32xf32, #tpu.memory_space<vmem>>, vector<1x32x32xf32>
    %48 = vector.shape_cast %47 : vector<1x32x32xf32> to vector<32x32xf32>
    %cst_35 = arith.constant dense<0.000000e+00> : vector<16x32xf32>
    %49 = tpu.matmul %46, %48, %cst_35 {dimension_numbers = #tpu.dot_dimension_numbers<[1], [0], [0], [1], [0, 0, 1, 1], [], []>} : vector<16x32xf32>, vector<32x32xf32>, vector<16x32xf32> -> vector<16x32xf32>
    %50 = arith.addf %38, %49 : vector<16x32xf32>
    %c2 = arith.constant 2 : index
    %c0_36 = arith.constant 0 : index
    %c0_37 = arith.constant 0 : index
    %51 = vector.load %arg5[%c2, %c0_36, %c0_37] : memref<4x16x16xbf16, #tpu.memory_space<vmem>>, vector<1x16x16xbf16>
    %52 = vector.shape_cast %51 : vector<1x16x16xbf16> to vector<16x16xbf16>
    %53 = arith.extf %52 : vector<16x16xbf16> to vector<16x16xf32>
    %cst_38 = arith.constant dense<0.000000e+00> : vector<16x32xf32>
    %54 = tpu.matmul %53, %23, %cst_38 {dimension_numbers = #tpu.dot_dimension_numbers<[1], [0], [0], [1], [0, 0, 1, 1], [], []>} : vector<16x16xf32>, vector<16x32xf32>, vector<16x32xf32> -> vector<16x32xf32>
    %c2_39 = arith.constant 2 : index
    %c0_40 = arith.constant 0 : index
    %c0_41 = arith.constant 0 : index
    %55 = vector.load %arg6[%c2_39, %c0_40, %c0_41] : memref<4x16x32xbf16, #tpu.memory_space<vmem>>, vector<1x16x32xbf16>
    %56 = vector.shape_cast %55 : vector<1x16x32xbf16> to vector<16x32xbf16>
    %57 = arith.extf %56 : vector<16x32xbf16> to vector<16x32xf32>
    %58 = arith.mulf %54, %57 : vector<16x32xf32>
    %c2_42 = arith.constant 2 : index
    %c0_43 = arith.constant 0 : index
    %c0_44 = arith.constant 0 : index
    %59 = vector.load %arg7[%c2_42, %c0_43, %c0_44] : memref<4x32x32xf32, #tpu.memory_space<vmem>>, vector<1x32x32xf32>
    %60 = vector.shape_cast %59 : vector<1x32x32xf32> to vector<32x32xf32>
    %cst_45 = arith.constant dense<0.000000e+00> : vector<16x32xf32>
    %61 = tpu.matmul %58, %60, %cst_45 {dimension_numbers = #tpu.dot_dimension_numbers<[1], [0], [0], [1], [0, 0, 1, 1], [], []>} : vector<16x32xf32>, vector<32x32xf32>, vector<16x32xf32> -> vector<16x32xf32>
    %62 = arith.addf %50, %61 : vector<16x32xf32>
    %c3 = arith.constant 3 : index
    %c0_46 = arith.constant 0 : index
    %c0_47 = arith.constant 0 : index
    %63 = vector.load %arg5[%c3, %c0_46, %c0_47] : memref<4x16x16xbf16, #tpu.memory_space<vmem>>, vector<1x16x16xbf16>
    %64 = vector.shape_cast %63 : vector<1x16x16xbf16> to vector<16x16xbf16>
    %65 = arith.extf %64 : vector<16x16xbf16> to vector<16x16xf32>
    %cst_48 = arith.constant dense<0.000000e+00> : vector<16x32xf32>
    %66 = tpu.matmul %65, %23, %cst_48 {dimension_numbers = #tpu.dot_dimension_numbers<[1], [0], [0], [1], [0, 0, 1, 1], [], []>} : vector<16x16xf32>, vector<16x32xf32>, vector<16x32xf32> -> vector<16x32xf32>
    %c3_49 = arith.constant 3 : index
    %c0_50 = arith.constant 0 : index
    %c0_51 = arith.constant 0 : index
    %67 = vector.load %arg6[%c3_49, %c0_50, %c0_51] : memref<4x16x32xbf16, #tpu.memory_space<vmem>>, vector<1x16x32xbf16>
    %68 = vector.shape_cast %67 : vector<1x16x32xbf16> to vector<16x32xbf16>
    %69 = arith.extf %68 : vector<16x32xbf16> to vector<16x32xf32>
    %70 = arith.mulf %66, %69 : vector<16x32xf32>
    %c3_52 = arith.constant 3 : index
    %c0_53 = arith.constant 0 : index
    %c0_54 = arith.constant 0 : index
    %71 = vector.load %arg7[%c3_52, %c0_53, %c0_54] : memref<4x32x32xf32, #tpu.memory_space<vmem>>, vector<1x32x32xf32>
    %72 = vector.shape_cast %71 : vector<1x32x32xf32> to vector<32x32xf32>
    %cst_55 = arith.constant dense<0.000000e+00> : vector<16x32xf32>
    %73 = tpu.matmul %70, %72, %cst_55 {dimension_numbers = #tpu.dot_dimension_numbers<[1], [0], [0], [1], [0, 0, 1, 1], [], []>} : vector<16x32xf32>, vector<32x32xf32>, vector<16x32xf32> -> vector<16x32xf32>
    %74 = arith.addf %62, %73 : vector<16x32xf32>
    %75 = arith.addf %74, %0 : vector<16x32xf32>
    %76 = vector.extract_strided_slice %24 {offsets = [1, 0], sizes = [1, 32], strides = [1, 1]} : vector<6x32xf32> to vector<1x32xf32>
    %77 = vector.extract_strided_slice %24 {offsets = [2, 0], sizes = [1, 32], strides = [1, 1]} : vector<6x32xf32> to vector<1x32xf32>
    %cst_56 = arith.constant dense<0.000000e+00> : vector<16xf32>
    %78 = vector.multi_reduction <add>, %75, %cst_56 [1] : vector<16x32xf32> to vector<16xf32>
    %79 = vector.shape_cast %78 : vector<16xf32> to vector<16x1xf32>
    %cst_57 = arith.constant 3.200000e+01 : f32
    %80 = vector.broadcast %cst_57 : f32 to vector<16x1xf32>
    %81 = arith.divf %79, %80 : vector<16x1xf32>
    %82 = vector.broadcast %81 : vector<16x1xf32> to vector<16x32xf32>
    %83 = arith.subf %75, %82 : vector<16x32xf32>
    %84 = arith.mulf %83, %83 : vector<16x32xf32>
    %cst_58 = arith.constant dense<0.000000e+00> : vector<16xf32>
    %85 = vector.multi_reduction <add>, %84, %cst_58 [1] : vector<16x32xf32> to vector<16xf32>
    %86 = vector.shape_cast %85 : vector<16xf32> to vector<16x1xf32>
    %cst_59 = arith.constant 3.200000e+01 : f32
    %87 = vector.broadcast %cst_59 : f32 to vector<16x1xf32>
    %88 = arith.divf %86, %87 : vector<16x1xf32>
    %cst_60 = arith.constant 9.99999974E-6 : f32
    %89 = vector.broadcast %cst_60 : f32 to vector<16x1xf32>
    %90 = arith.addf %88, %89 : vector<16x1xf32>
    %91 = math.rsqrt %90 : vector<16x1xf32>
    %92 = vector.broadcast %91 : vector<16x1xf32> to vector<16x32xf32>
    %93 = arith.mulf %83, %92 : vector<16x32xf32>
    %94 = vector.broadcast %76 : vector<1x32xf32> to vector<16x32xf32>
    %95 = arith.mulf %93, %94 : vector<16x32xf32>
    %96 = vector.broadcast %77 : vector<1x32xf32> to vector<16x32xf32>
    %97 = arith.addf %95, %96 : vector<16x32xf32>
    %c0_61 = arith.constant 0 : index
    %c0_62 = arith.constant 0 : index
    %98 = vector.load %arg8[%c0_61, %c0_62] : memref<32x128xf32, #tpu.memory_space<vmem>>, vector<32x128xf32>
    %cst_63 = arith.constant dense<0.000000e+00> : vector<16x128xf32>
    %99 = tpu.matmul %97, %98, %cst_63 {dimension_numbers = #tpu.dot_dimension_numbers<[1], [0], [0], [1], [0, 0, 1, 1], [], []>} : vector<16x32xf32>, vector<32x128xf32>, vector<16x128xf32> -> vector<16x128xf32>
    %c0_64 = arith.constant 0 : index
    %c0_65 = arith.constant 0 : index
    %100 = vector.load %arg9[%c0_64, %c0_65] : memref<1x128xf32, #tpu.memory_space<vmem>>, vector<1x128xf32>
    %101 = vector.broadcast %100 : vector<1x128xf32> to vector<16x128xf32>
    %102 = arith.addf %99, %101 : vector<16x128xf32>
    %cst_66 = arith.constant 0.000000e+00 : f32
    %103 = vector.broadcast %cst_66 : f32 to vector<16x128xf32>
    %104 = arith.maximumf %102, %103 : vector<16x128xf32>
    %c0_67 = arith.constant 0 : index
    %c0_68 = arith.constant 0 : index
    %105 = vector.load %arg10[%c0_67, %c0_68] : memref<128x32xf32, #tpu.memory_space<vmem>>, vector<128x32xf32>
    %cst_69 = arith.constant dense<0.000000e+00> : vector<16x32xf32>
    %106 = tpu.matmul %104, %105, %cst_69 {dimension_numbers = #tpu.dot_dimension_numbers<[1], [0], [0], [1], [0, 0, 1, 1], [], []>} : vector<16x128xf32>, vector<128x32xf32>, vector<16x32xf32> -> vector<16x32xf32>
    %107 = vector.extract_strided_slice %24 {offsets = [3, 0], sizes = [1, 32], strides = [1, 1]} : vector<6x32xf32> to vector<1x32xf32>
    %108 = vector.broadcast %107 : vector<1x32xf32> to vector<16x32xf32>
    %109 = arith.addf %106, %108 : vector<16x32xf32>
    %110 = arith.addf %109, %97 : vector<16x32xf32>
    %111 = vector.extract_strided_slice %24 {offsets = [4, 0], sizes = [1, 32], strides = [1, 1]} : vector<6x32xf32> to vector<1x32xf32>
    %112 = vector.extract_strided_slice %24 {offsets = [5, 0], sizes = [1, 32], strides = [1, 1]} : vector<6x32xf32> to vector<1x32xf32>
    %cst_70 = arith.constant dense<0.000000e+00> : vector<16xf32>
    %113 = vector.multi_reduction <add>, %110, %cst_70 [1] : vector<16x32xf32> to vector<16xf32>
    %114 = vector.shape_cast %113 : vector<16xf32> to vector<16x1xf32>
    %cst_71 = arith.constant 3.200000e+01 : f32
    %115 = vector.broadcast %cst_71 : f32 to vector<16x1xf32>
    %116 = arith.divf %114, %115 : vector<16x1xf32>
    %117 = vector.broadcast %116 : vector<16x1xf32> to vector<16x32xf32>
    %118 = arith.subf %110, %117 : vector<16x32xf32>
    %119 = arith.mulf %118, %118 : vector<16x32xf32>
    %cst_72 = arith.constant dense<0.000000e+00> : vector<16xf32>
    %120 = vector.multi_reduction <add>, %119, %cst_72 [1] : vector<16x32xf32> to vector<16xf32>
    %121 = vector.shape_cast %120 : vector<16xf32> to vector<16x1xf32>
    %cst_73 = arith.constant 3.200000e+01 : f32
    %122 = vector.broadcast %cst_73 : f32 to vector<16x1xf32>
    %123 = arith.divf %121, %122 : vector<16x1xf32>
    %cst_74 = arith.constant 9.99999974E-6 : f32
    %124 = vector.broadcast %cst_74 : f32 to vector<16x1xf32>
    %125 = arith.addf %123, %124 : vector<16x1xf32>
    %126 = math.rsqrt %125 : vector<16x1xf32>
    %127 = vector.broadcast %126 : vector<16x1xf32> to vector<16x32xf32>
    %128 = arith.mulf %118, %127 : vector<16x32xf32>
    %129 = vector.broadcast %111 : vector<1x32xf32> to vector<16x32xf32>
    %130 = arith.mulf %128, %129 : vector<16x32xf32>
    %131 = vector.broadcast %112 : vector<1x32xf32> to vector<16x32xf32>
    %132 = arith.addf %130, %131 : vector<16x32xf32>
    %c0_75 = arith.constant 0 : index
    %c0_76 = arith.constant 0 : index
    %133 = vector.load %arg12[%c0_75, %c0_76] : memref<16x32xf32, #tpu.memory_space<vmem>>, vector<16x32xf32>
    tpu.vector_store %arg12[%c0_75, %c0_76], %132 {strides = array<i32>} : memref<16x32xf32, #tpu.memory_space<vmem>>, vector<16x32xf32>,
    return
  }
}

</mosaic_0001>

<llo_original>
// kernel: transformer_decoder_block.1
$region0: #{transformer_decoder_block.1}
  #allocation0 [shape = 'u32[]', space=smem, size = 0x4, offset = 0x4, fixed_abs, tag = 'smem constant byte address 0x4 - core index']
  #allocation1 [shape = 'u32[72,128]{1,0:T(1,128)}', space=vmem, size = 0x9000, scoped, tag = 'internal scratch']
  %s0 = inlined_call_operand.hbm [shape: f32[16,32], index: 0, kind: input, shape index: {}]
  %s1 = inlined_call_operand.vmem [shape: f32[32,384], index: 1, kind: input, shape index: {}]
  %s2 = inlined_call_operand.vmem [shape: bf16[128,128], index: 2, kind: input, shape index: {}]
  %s3 = inlined_call_operand.vmem [shape: bf16[128,32], index: 3, kind: input, shape index: {}]
  %s4 = inlined_call_operand.vmem [shape: bf16[128,32], index: 4, kind: input, shape index: {}]
  %s5 = inlined_call_operand.hbm [shape: bf16[4,16,16], index: 5, kind: input, shape index: {}]
  %s6 = inlined_call_operand.hbm [shape: bf16[4,16,32], index: 6, kind: input, shape index: {}]
  %s7 = inlined_call_operand.vmem [shape: f32[4,32,32], index: 7, kind: input, shape index: {}]
  %s8 = inlined_call_operand.hbm [shape: f32[32,128], index: 8, kind: input, shape index: {}]
  %s9 = inlined_call_operand.hbm [shape: f32[1,128], index: 9, kind: input, shape index: {}]
  %s10 = inlined_call_operand.vmem [shape: f32[128,32], index: 10, kind: input, shape index: {}]
  %s11 = inlined_call_operand.hbm [shape: f32[6,32], index: 11, kind: input, shape index: {}]
  %s12 = inlined_call_operand.hbm [shape: f32[16,32], index: 12, kind: output, shape index: {}]
  %s13 = sld [smem:[#allocation0]]
  $region82: #{transformer_decoder_block.1} parent=0
    _
  %s15 = ssub.s32 1, %s13
  %s16 = scalar_select 0, %s15, %s13
  $region1: #{transformer_decoder_block.1} parent=0
    #allocation2 [shape = 'u8[8192]{0}', space=vmem, size = 0x2000, scoped, tag = 'input window, operand 0, single buffered']
    #allocation3 [shape = 's32[1]{0}', space=sflag, size = 0x4, scoped, tag = 'scoped memory for transformer_decoder_block.1']
    #allocation4 [shape = 's32[1]{0}', space=sflag, size = 0x4, scoped, tag = 'scoped memory for transformer_decoder_block.1']
    #allocation5 [shape = 'u8[16384]{0}', space=vmem, size = 0x4000, scoped, tag = 'input window, operand 5, single buffered']
    #allocation6 [shape = 's32[1]{0}', space=sflag, size = 0x4, scoped, tag = 'scoped memory for transformer_decoder_block.1']
    #allocation7 [shape = 'u8[16384]{0}', space=vmem, size = 0x4000, scoped, tag = 'input window, operand 6, single buffered']
    #allocation8 [shape = 'u8[16384]{0}', space=vmem, size = 0x4000, scoped, tag = 'input window, operand 8, single buffered']
    #allocation9 [shape = 's32[1]{0}', space=sflag, size = 0x4, scoped, tag = 'scoped memory for transformer_decoder_block.1']
    #allocation10 [shape = 'u8[512]{0}', space=vmem, size = 0x400, scoped, tag = 'input window, operand 9, single buffered']
    #allocation11 [shape = 'u8[4096]{0}', space=vmem, size = 0x1000, scoped, tag = 'input window, operand 11, single buffered']
    #allocation12 [shape = 's32[1]{0}', space=sflag, size = 0x4, scoped, tag = 'scoped memory for transformer_decoder_block.1']
    #allocation13 [shape = 'u8[8192]{0}', space=vmem, size = 0x2000, scoped, tag = 'output window, operand 0, single buffered']
    %17 = vsyncpa [#allocation3], 0
    %18 = vsyncpa [#allocation6], 0
    %19 = vsyncpa [#allocation9], 0
    %20 = vsyncpa [#allocation12], 0
    %21 = vsyncpa [#allocation4], 0
    // Predicated region
    $region2: #{transformer_decoder_block.1} parent=1 // pred_check
      _
    $region3: #{transformer_decoder_block.1} parent=1 // pred_check_branch
      %23 = sbr.rel (0) target = $region5
    $region4: #{transformer_decoder_block.1} parent=1 // pred_region
      %25 = vsyncadd [#allocation3], 0
      %s26 = sshll.u32 %s0, 4
      %s27 = int_to_ptr.hbm [resolvable:$true] %s26
      %s28 = sshll.u32 [#allocation2], 4
      %s29 = int_to_ptr.vmem [resolvable:$true] %s28
      %34 = dma.hbm_to_vmem [thread:$0]  %s27, 256, %s29, [#allocation3], 128, 128, 8
    $region5: #{transformer_decoder_block.1} parent=1 // pred_fallthru
      _
    // Predicated region
    $region6: #{transformer_decoder_block.1} parent=1 // pred_check
      _
    $region7: #{transformer_decoder_block.1} parent=1 // pred_check_branch
      %36 = sbr.rel (0) target = $region9
    $region8: #{transformer_decoder_block.1} parent=1 // pred_region
      _
    $region9: #{transformer_decoder_block.1} parent=1 // pred_fallthru
      _
    // Predicated region
    $region10: #{transformer_decoder_block.1} parent=1 // pred_check
      _
    $region11: #{transformer_decoder_block.1} parent=1 // pred_check_branch
      %38 = sbr.rel (0) target = $region13
    $region12: #{transformer_decoder_block.1} parent=1 // pred_region
      _
    $region13: #{transformer_decoder_block.1} parent=1 // pred_fallthru
      _
    // Predicated region
    $region14: #{transformer_decoder_block.1} parent=1 // pred_check
      _
    $region15: #{transformer_decoder_block.1} parent=1 // pred_check_branch
      %40 = sbr.rel (0) target = $region17
    $region16: #{transformer_decoder_block.1} parent=1 // pred_region
      _
    $region17: #{transformer_decoder_block.1} parent=1 // pred_fallthru
      _
    // Predicated region
    $region18: #{transformer_decoder_block.1} parent=1 // pred_check
      _
    $region19: #{transformer_decoder_block.1} parent=1 // pred_check_branch
      %42 = sbr.rel (0) target = $region21
    $region20: #{transformer_decoder_block.1} parent=1 // pred_region
      _
    $region21: #{transformer_decoder_block.1} parent=1 // pred_fallthru
      _
    // Predicated region
    $region22: #{transformer_decoder_block.1} parent=1 // pred_check
      _
    $region23: #{transformer_decoder_block.1} parent=1 // pred_check_branch
      %44 = sbr.rel (0) target = $region25
    $region24: #{transformer_decoder_block.1} parent=1 // pred_region
      %46 = vsyncadd [#allocation6], 0
      %s47 = sshll.u32 %s5, 4
      %s48 = int_to_ptr.hbm [resolvable:$true] %s47
      %s49 = sshll.u32 [#allocation5], 4
      %s50 = int_to_ptr.vmem [resolvable:$true] %s49
      %55 = dma.hbm_to_vmem [thread:$0]  %s48, 512, %s50, [#allocation6], 64, 64, 4
    $region25: #{transformer_decoder_block.1} parent=1 // pred_fallthru
      _
    // Predicated region
    $region26: #{transformer_decoder_block.1} parent=1 // pred_check
      _
    $region27: #{transformer_decoder_block.1} parent=1 // pred_check_branch
      %57 = sbr.rel (0) target = $region29
    $region28: #{transformer_decoder_block.1} parent=1 // pred_region
      %59 = vsyncadd [#allocation6], 0
      %s60 = sshll.u32 %s6, 4
      %s61 = int_to_ptr.hbm [resolvable:$true] %s60
      %s62 = sshll.u32 [#allocation7], 4
      %s63 = int_to_ptr.vmem [resolvable:$true] %s62
      %68 = dma.hbm_to_vmem [thread:$0]  %s61, 512, %s63, [#allocation6], 64, 64, 4
    $region29: #{transformer_decoder_block.1} parent=1 // pred_fallthru
      _
    // Predicated region
    $region30: #{transformer_decoder_block.1} parent=1 // pred_check
      _
    $region31: #{transformer_decoder_block.1} parent=1 // pred_check_branch
      %70 = sbr.rel (0) target = $region33
    $region32: #{transformer_decoder_block.1} parent=1 // pred_region
      _
    $region33: #{transformer_decoder_block.1} parent=1 // pred_fallthru
      _
    // Predicated region
    $region34: #{transformer_decoder_block.1} parent=1 // pred_check
      _
    $region35: #{transformer_decoder_block.1} parent=1 // pred_check_branch
      %72 = sbr.rel (0) target = $region37
    $region36: #{transformer_decoder_block.1} parent=1 // pred_region
      %74 = vsyncadd [#allocation9], 0
      %s75 = sshll.u32 %s8, 4
      %s76 = int_to_ptr.hbm [resolvable:$true] %s75
      %s77 = sshll.u32 [#allocation8], 4
      %s78 = int_to_ptr.vmem [resolvable:$true] %s77
      %83 = dma.hbm_to_vmem [thread:$0]  %s76, 512, %s78, [#allocation9], 128, 128, 8
    $region37: #{transformer_decoder_block.1} parent=1 // pred_fallthru
      _
    // Predicated region
    $region38: #{transformer_decoder_block.1} parent=1 // pred_check
      _
    $region39: #{transformer_decoder_block.1} parent=1 // pred_check_branch
      %85 = sbr.rel (0) target = $region41
    $region40: #{transformer_decoder_block.1} parent=1 // pred_region
      %87 = vsyncadd [#allocation9], 0
      %s89 = sshll.u32 %s9, 4
      %s90 = int_to_ptr.hbm [resolvable:$true] %s89
      %s91 = sshll.u32 [#allocation10], 4
      %s92 = int_to_ptr.vmem [resolvable:$true] %s91
      %94 = dma.hbm_to_vmem [thread:$0]  %s90, 16, %s92, [#allocation9]
    $region41: #{transformer_decoder_block.1} parent=1 // pred_fallthru
      _
    // Predicated region
    $region42: #{transformer_decoder_block.1} parent=1 // pred_check
      _
    $region43: #{transformer_decoder_block.1} parent=1 // pred_check_branch
      %96 = sbr.rel (0) target = $region45
    $region44: #{transformer_decoder_block.1} parent=1 // pred_region
      _
    $region45: #{transformer_decoder_block.1} parent=1 // pred_fallthru
      _
    // Predicated region
    $region46: #{transformer_decoder_block.1} parent=1 // pred_check
      _
    $region47: #{transformer_decoder_block.1} parent=1 // pred_check_branch
      %98 = sbr.rel (0) target = $region49
    $region48: #{transformer_decoder_block.1} parent=1 // pred_region
      %100 = vsyncadd [#allocation12], 0
      %s102 = sshll.u32 %s11, 4
      %s103 = int_to_ptr.hbm [resolvable:$true] %s102
      %s104 = sshll.u32 [#allocation11], 4
      %s105 = int_to_ptr.vmem [resolvable:$true] %s104
      %107 = dma.hbm_to_vmem [thread:$0]  %s103, 128, %s105, [#allocation12]
    $region49: #{transformer_decoder_block.1} parent=1 // pred_fallthru
      _
    // Predicated region
    $region50: #{transformer_decoder_block.1} parent=1 // pred_check
      _
    $region51: #{transformer_decoder_block.1} parent=1 // pred_check_branch
      %109 = sbr.rel (0) target = $region53
    $region52: #{transformer_decoder_block.1} parent=1 // pred_region
      %111 = dma.done [#allocation3], 256
    $region53: #{transformer_decoder_block.1} parent=1 // pred_fallthru
      _
    // Predicated region
    $region54: #{transformer_decoder_block.1} parent=1 // pred_check
      _
    $region55: #{transformer_decoder_block.1} parent=1 // pred_check_branch
      %113 = sbr.rel (0) target = $region57
    $region56: #{transformer_decoder_block.1} parent=1 // pred_region
      %115 = dma.done [#allocation6], 512
    $region57: #{transformer_decoder_block.1} parent=1 // pred_fallthru
      _
    // Predicated region
    $region58: #{transformer_decoder_block.1} parent=1 // pred_check
      _
    $region59: #{transformer_decoder_block.1} parent=1 // pred_check_branch
      %117 = sbr.rel (0) target = $region61
    $region60: #{transformer_decoder_block.1} parent=1 // pred_region
      %119 = dma.done [#allocation6], 512
    $region61: #{transformer_decoder_block.1} parent=1 // pred_fallthru
      _
    // Predicated region
    $region62: #{transformer_decoder_block.1} parent=1 // pred_check
      _
    $region63: #{transformer_decoder_block.1} parent=1 // pred_check_branch
      %121 = sbr.rel (0) target = $region65
    $region64: #{transformer_decoder_block.1} parent=1 // pred_region
      %123 = dma.done [#allocation9], 512
    $region65: #{transformer_decoder_block.1} parent=1 // pred_fallthru
      _
    // Predicated region
    $region66: #{transformer_decoder_block.1} parent=1 // pred_check
      _
    $region67: #{transformer_decoder_block.1} parent=1 // pred_check_branch
      %125 = sbr.rel (0) target = $region69
    $region68: #{transformer_decoder_block.1} parent=1 // pred_region
      %127 = dma.done [#allocation9], 16
    $region69: #{transformer_decoder_block.1} parent=1 // pred_fallthru
      _
    // Predicated region
    $region70: #{transformer_decoder_block.1} parent=1 // pred_check
      _
    $region71: #{transformer_decoder_block.1} parent=1 // pred_check_branch
      %129 = sbr.rel (0) target = $region73
    $region72: #{transformer_decoder_block.1} parent=1 // pred_region
      %131 = dma.done [#allocation12], 128
    $region73: #{transformer_decoder_block.1} parent=1 // pred_fallthru
      _
    %v132 = vld [vmem:[#allocation2] sm:$0xff]
    %v133 = vld [vmem:[#allocation2 + $0x8] sm:$0xff]
    %v134 = vld [vmem:[%s1] sm:$0xff]
    %v135 = vld [vmem:[%s1 + $0x8] sm:$0xff]
    %v136 = vld [vmem:[%s1 + $0x10] sm:$0xff]
    %v137 = vld [vmem:[%s1 + $0x18] sm:$0xff]
    %v138 = vld [vmem:[%s1 + $0x20] sm:$0xff]
    %v139 = vld [vmem:[%s1 + $0x28] sm:$0xff]
    %v140 = vld [vmem:[%s1 + $0x30] sm:$0xff]
    %v141 = vld [vmem:[%s1 + $0x38] sm:$0xff]
    %v142 = vld [vmem:[%s1 + $0x40] sm:$0xff]
    %v143 = vld [vmem:[%s1 + $0x48] sm:$0xff]
    %v144 = vld [vmem:[%s1 + $0x50] sm:$0xff]
    %v145 = vld [vmem:[%s1 + $0x58] sm:$0xff]
    %vm146 = vcmask 261120
    %v148 = vsel %vm146, %v132, 0
    %v151 = vsel %vm146, %v133, 0
    %153 = vmatpush.msra.mxu0 0.0
    %154 = vmatpush.msra.mxu0 0.0
    %155 = vmatpush.msra.mxu0 0.0
    %156 = vmatpush.msra.mxu0 0.0
    %157 = vmatpush.msra.mxu0 0.0
    %158 = vmatpush.msra.mxu0 0.0
    %159 = vmatpush.msra.mxu0 0.0
    %160 = vmatpush.msra.mxu0 0.0
    %161 = vmatpush.msra.mxu0 0.0
    %162 = vmatpush.msra.mxu0 0.0
    %163 = vmatpush.msra.mxu0 0.0
    %164 = vmatpush.msra.mxu0 0.0
    %165 = vmatpush.msra.mxu0 %v143
    %166 = vmatpush.msra.mxu0 %v140
    %167 = vmatpush.msra.mxu0 %v137
    %168 = vmatpush.msra.mxu0 %v134
    %169 = vmatmul.f32.gmra.mxu0 %v148
    %v170 = vpop.f32.mrf.mxu0
    %v171 = vadd.f32 0.0, %v170
    %172 = vmatmul.f32.gmra.mxu0 %v151
    %v173 = vpop.f32.mrf.mxu0
    %v174 = vadd.f32 0.0, %v173
    %175 = vdwg.mxu0
    %176 = vmatpush.msra.mxu0 0.0
    %177 = vmatpush.msra.mxu0 0.0
    %178 = vmatpush.msra.mxu0 0.0
    %179 = vmatpush.msra.mxu0 0.0
    %180 = vmatpush.msra.mxu0 0.0
    %181 = vmatpush.msra.mxu0 0.0
    %182 = vmatpush.msra.mxu0 0.0
    %183 = vmatpush.msra.mxu0 0.0
    %184 = vmatpush.msra.mxu0 0.0
    %185 = vmatpush.msra.mxu0 0.0
    %186 = vmatpush.msra.mxu0 0.0
    %187 = vmatpush.msra.mxu0 0.0
    %188 = vmatpush.msra.mxu0 %v144
    %189 = vmatpush.msra.mxu0 %v141
    %190 = vmatpush.msra.mxu0 %v138
    %191 = vmatpush.msra.mxu0 %v135
    %192 = vmatmul.f32.gmra.mxu0 %v148
    %v193 = vpop.f32.mrf.mxu0
    %v194 = vadd.f32 0.0, %v193
    %195 = vmatmul.f32.gmra.mxu0 %v151
    %v196 = vpop.f32.mrf.mxu0
    %v197 = vadd.f32 0.0, %v196
    %198 = vdwg.mxu0
    %199 = vmatpush.msra.mxu0 0.0
    %200 = vmatpush.msra.mxu0 0.0
    %201 = vmatpush.msra.mxu0 0.0
    %202 = vmatpush.msra.mxu0 0.0
    %203 = vmatpush.msra.mxu0 0.0
    %204 = vmatpush.msra.mxu0 0.0
    %205 = vmatpush.msra.mxu0 0.0
    %206 = vmatpush.msra.mxu0 0.0
    %207 = vmatpush.msra.mxu0 0.0
    %208 = vmatpush.msra.mxu0 0.0
    %209 = vmatpush.msra.mxu0 0.0
    %210 = vmatpush.msra.mxu0 0.0
    %211 = vmatpush.msra.mxu0 %v145
    %212 = vmatpush.msra.mxu0 %v142
    %213 = vmatpush.msra.mxu0 %v139
    %214 = vmatpush.msra.mxu0 %v136
    %215 = vmatmul.f32.gmra.mxu0 %v148
    %v216 = vpop.f32.mrf.mxu0
    %v217 = vadd.f32 0.0, %v216
    %218 = vmatmul.f32.gmra.mxu0 %v151
    %v219 = vpop.f32.mrf.mxu0
    %v220 = vadd.f32 0.0, %v219
    %221 = vdwg.mxu0
    %v222 = vld [vmem:[%s2] sm:$0xf]
    %v223 = vld [vmem:[%s2 + $0x4] sm:$0xf]
    %v224 = vld [vmem:[%s2 + $0x8] sm:$0xf]
    %v225 = vld [vmem:[%s2 + $0xc] sm:$0xf]
    %v226 = vld [vmem:[%s2 + $0x10] sm:$0xf]
    %v227 = vld [vmem:[%s2 + $0x14] sm:$0xf]
    %v228 = vld [vmem:[%s2 + $0x18] sm:$0xf]
    %v229 = vld [vmem:[%s2 + $0x1c] sm:$0xf]
    %v230 = vld [vmem:[%s2 + $0x20] sm:$0xf]
    %v231 = vld [vmem:[%s2 + $0x24] sm:$0xf]
    %v232 = vld [vmem:[%s2 + $0x28] sm:$0xf]
    %v233 = vld [vmem:[%s2 + $0x2c] sm:$0xf]
    %v234 = vld [vmem:[%s2 + $0x30] sm:$0xf]
    %v235 = vld [vmem:[%s2 + $0x34] sm:$0xf]
    %v236 = vld [vmem:[%s2 + $0x38] sm:$0xf]
    %v237 = vld [vmem:[%s2 + $0x3c] sm:$0xf]
    %v238 = vunpack.c.l.bf16 %v222
    %v239 = vunpack.c.l.bf16 %v223
    %v240 = vunpack.c.l.bf16 %v224
    %v241 = vunpack.c.l.bf16 %v225
    %v242 = vunpack.c.l.bf16 %v226
    %v243 = vunpack.c.l.bf16 %v227
    %v244 = vunpack.c.l.bf16 %v228
    %v245 = vunpack.c.l.bf16 %v229
    %v246 = vunpack.c.l.bf16 %v230
    %v247 = vunpack.c.l.bf16 %v231
    %v248 = vunpack.c.l.bf16 %v232
    %v249 = vunpack.c.l.bf16 %v233
    %v250 = vunpack.c.l.bf16 %v234
    %v251 = vunpack.c.l.bf16 %v235
    %v252 = vunpack.c.l.bf16 %v236
    %v253 = vunpack.c.l.bf16 %v237
    %v254 = vmul.f32 %v171, %v194
    %v255 = vmul.f32 %v174, %v197
    %256 = vmatpush.msra.mxu0 %v253
    %257 = vmatpush.msra.mxu0 %v252
    %258 = vmatpush.msra.mxu0 %v251
    %259 = vmatpush.msra.mxu0 %v250
    %260 = vmatpush.msra.mxu0 %v249
    %261 = vmatpush.msra.mxu0 %v248
    %262 = vmatpush.msra.mxu0 %v247
    %263 = vmatpush.msra.mxu0 %v246
    %264 = vmatpush.msra.mxu0 %v245
    %265 = vmatpush.msra.mxu0 %v244
    %266 = vmatpush.msra.mxu0 %v243
    %267 = vmatpush.msra.mxu0 %v242
    %268 = vmatpush.msra.mxu0 %v241
    %269 = vmatpush.msra.mxu0 %v240
    %270 = vmatpush.msra.mxu0 %v239
    %271 = vmatpush.msra.mxu0 %v238
    %272 = vmatmul.f32.gmra.mxu0 %v254
    %v273 = vpop.f32.mrf.mxu0
    %v274 = vadd.f32 0.0, %v273
    %275 = vmatmul.f32.gmra.mxu0 %v255
    %v276 = vpop.f32.mrf.mxu0
    %v277 = vadd.f32 0.0, %v276
    %278 = vdwg.mxu0
    %279 = vmax.xlane.f32.xlu0 %v274
    %v280 = vpop.xlane.xlu0 %279
    %281 = vmax.xlane.f32.xlu0 %v277
    %v282 = vpop.xlane.xlu0 %281
    %v283 = vsub.f32 %v274, %v280
    %v284 = vsub.f32 %v277, %v282
    %v285 = vmul.f32 %v283, 1.442695
    %v286 = vpow.pop %v285
    %v287 = vmul.f32 %v284, 1.442695
    %v288 = vpow.pop %v287
    %v289 = vmul.f32 %v286, %v217
    %v290 = vmul.f32 %v288, %v220
    %v291 = vld [vmem:[%s3] sm:$0xf]
    %v292 = vld [vmem:[%s3 + $0x4] sm:$0xf]
    %v293 = vld [vmem:[%s3 + $0x8] sm:$0xf]
    %v294 = vld [vmem:[%s3 + $0xc] sm:$0xf]
    %v295 = vld [vmem:[%s3 + $0x10] sm:$0xf]
    %v296 = vld [vmem:[%s3 + $0x14] sm:$0xf]
    %v297 = vld [vmem:[%s3 + $0x18] sm:$0xf]
    %v298 = vld [vmem:[%s3 + $0x1c] sm:$0xf]
    %v299 = vld [vmem:[%s3 + $0x20] sm:$0xf]
    %v300 = vld [vmem:[%s3 + $0x24] sm:$0xf]
    %v301 = vld [vmem:[%s3 + $0x28] sm:$0xf]
    %v302 = vld [vmem:[%s3 + $0x2c] sm:$0xf]
    %v303 = vld [vmem:[%s3 + $0x30] sm:$0xf]
    %v304 = vld [vmem:[%s3 + $0x34] sm:$0xf]
    %v305 = vld [vmem:[%s3 + $0x38] sm:$0xf]
    %v306 = vld [vmem:[%s3 + $0x3c] sm:$0xf]
    %v307 = vunpack.c.l.bf16 %v291
    %v308 = vunpack.c.l.bf16 %v292
    %v309 = vunpack.c.l.bf16 %v293
    %v310 = vunpack.c.l.bf16 %v294
    %v311 = vunpack.c.l.bf16 %v295
    %v312 = vunpack.c.l.bf16 %v296
    %v313 = vunpack.c.l.bf16 %v297
    %v314 = vunpack.c.l.bf16 %v298
    %v315 = vunpack.c.l.bf16 %v299
    %v316 = vunpack.c.l.bf16 %v300
    %v317 = vunpack.c.l.bf16 %v301
    %v318 = vunpack.c.l.bf16 %v302
    %v319 = vunpack.c.l.bf16 %v303
    %v320 = vunpack.c.l.bf16 %v304
    %v321 = vunpack.c.l.bf16 %v305
    %v322 = vunpack.c.l.bf16 %v306
    %323 = vmatpush.msra.mxu0 %v322
    %324 = vmatpush.msra.mxu0 %v321
    %325 = vmatpush.msra.mxu0 %v320
    %326 = vmatpush.msra.mxu0 %v319
    %327 = vmatpush.msra.mxu0 %v318
    %328 = vmatpush.msra.mxu0 %v317
    %329 = vmatpush.msra.mxu0 %v316
    %330 = vmatpush.msra.mxu0 %v315
    %331 = vmatpush.msra.mxu0 %v314
    %332 = vmatpush.msra.mxu0 %v313
    %333 = vmatpush.msra.mxu0 %v312
    %334 = vmatpush.msra.mxu0 %v311
    %335 = vmatpush.msra.mxu0 %v310
    %336 = vmatpush.msra.mxu0 %v309
    %337 = vmatpush.msra.mxu0 %v308
    %338 = vmatpush.msra.mxu0 %v307
    %339 = vmatmul.f32.gmra.mxu0 %v289
    %v340 = vpop.f32.mrf.mxu0
    %v341 = vadd.f32 0.0, %v340
    %342 = vmatmul.f32.gmra.mxu0 %v290
    %v343 = vpop.f32.mrf.mxu0
    %v344 = vadd.f32 0.0, %v343
    %345 = vdwg.mxu0
    %v346 = vld [vmem:[%s4] sm:$0xf]
    %v347 = vld [vmem:[%s4 + $0x4] sm:$0xf]
    %v348 = vld [vmem:[%s4 + $0x8] sm:$0xf]
    %v349 = vld [vmem:[%s4 + $0xc] sm:$0xf]
    %v350 = vld [vmem:[%s4 + $0x10] sm:$0xf]
    %v351 = vld [vmem:[%s4 + $0x14] sm:$0xf]
    %v352 = vld [vmem:[%s4 + $0x18] sm:$0xf]
    %v353 = vld [vmem:[%s4 + $0x1c] sm:$0xf]
    %v354 = vld [vmem:[%s4 + $0x20] sm:$0xf]
    %v355 = vld [vmem:[%s4 + $0x24] sm:$0xf]
    %v356 = vld [vmem:[%s4 + $0x28] sm:$0xf]
    %v357 = vld [vmem:[%s4 + $0x2c] sm:$0xf]
    %v358 = vld [vmem:[%s4 + $0x30] sm:$0xf]
    %v359 = vld [vmem:[%s4 + $0x34] sm:$0xf]
    %v360 = vld [vmem:[%s4 + $0x38] sm:$0xf]
    %v361 = vld [vmem:[%s4 + $0x3c] sm:$0xf]
    %v362 = vunpack.c.l.bf16 %v346
    %v363 = vunpack.c.l.bf16 %v347
    %v364 = vunpack.c.l.bf16 %v348
    %v365 = vunpack.c.l.bf16 %v349
    %v366 = vunpack.c.l.bf16 %v350
    %v367 = vunpack.c.l.bf16 %v351
    %v368 = vunpack.c.l.bf16 %v352
    %v369 = vunpack.c.l.bf16 %v353
    %v370 = vunpack.c.l.bf16 %v354
    %v371 = vunpack.c.l.bf16 %v355
    %v372 = vunpack.c.l.bf16 %v356
    %v373 = vunpack.c.l.bf16 %v357
    %v374 = vunpack.c.l.bf16 %v358
    %v375 = vunpack.c.l.bf16 %v359
    %v376 = vunpack.c.l.bf16 %v360
    %v377 = vunpack.c.l.bf16 %v361
    %378 = vmatpush.msra.mxu0 %v377
    %379 = vmatpush.msra.mxu0 %v376
    %380 = vmatpush.msra.mxu0 %v375
    %381 = vmatpush.msra.mxu0 %v374
    %382 = vmatpush.msra.mxu0 %v373
    %383 = vmatpush.msra.mxu0 %v372
    %384 = vmatpush.msra.mxu0 %v371
    %385 = vmatpush.msra.mxu0 %v370
    %386 = vmatpush.msra.mxu0 %v369
    %387 = vmatpush.msra.mxu0 %v368
    %388 = vmatpush.msra.mxu0 %v367
    %389 = vmatpush.msra.mxu0 %v366
    %390 = vmatpush.msra.mxu0 %v365
    %391 = vmatpush.msra.mxu0 %v364
    %392 = vmatpush.msra.mxu0 %v363
    %393 = vmatpush.msra.mxu0 %v362
    %394 = vmatmul.f32.gmra.mxu0 %v286
    %v395 = vpop.f32.mrf.mxu0
    %v396 = vadd.f32 0.0, %v395
    %397 = vmatmul.f32.gmra.mxu0 %v288
    %v398 = vpop.f32.mrf.mxu0
    %v399 = vadd.f32 0.0, %v398
    %400 = vdwg.mxu0
    %v401 = vrcp.pop %v396
    %v402 = vrcp.pop %v399
    %v403 = vmul.f32 %v341, %v401
    %v404 = vmul.f32 %v344, %v402
    %v405 = vld [vmem:[#allocation11] sm:$0x3f]
    %v406 = vld [vmem:[#allocation5] sm:$0xf]
    %v407 = vld [vmem:[#allocation5 + $0x4] sm:$0xf]
    %v408 = vunpack.c.l.bf16 %v406
    %v409 = vunpack.c.l.bf16 %v407
    %vm410 = vcmask 130048
    %v412 = vsel %vm410, %v408, 0
    %v415 = vsel %vm410, %v409, 0
    %417 = vmatpush.msra.mxu0 0.0
    %418 = vmatpush.msra.mxu0 0.0
    %419 = vmatpush.msra.mxu0 0.0
    %420 = vmatpush.msra.mxu0 0.0
    %421 = vmatpush.msra.mxu0 0.0
    %422 = vmatpush.msra.mxu0 0.0
    %423 = vmatpush.msra.mxu0 0.0
    %424 = vmatpush.msra.mxu0 0.0
    %425 = vmatpush.msra.mxu0 0.0
    %426 = vmatpush.msra.mxu0 0.0
    %427 = vmatpush.msra.mxu0 0.0
    %428 = vmatpush.msra.mxu0 0.0
    %429 = vmatpush.msra.mxu0 0.0
    %430 = vmatpush.msra.mxu0 0.0
    %431 = vmatpush.msra.mxu0 %v404
    %432 = vmatpush.msra.mxu0 %v403
    %433 = vmatmul.f32.gmra.mxu0 %v412
    %v434 = vpop.f32.mrf.mxu0
    %v435 = vadd.f32 0.0, %v434
    %436 = vmatmul.f32.gmra.mxu0 %v415
    %v437 = vpop.f32.mrf.mxu0
    %v438 = vadd.f32 0.0, %v437
    %439 = vdwg.mxu0
    %v440 = vld [vmem:[#allocation7] sm:$0xf]
    %v441 = vld [vmem:[#allocation7 + $0x4] sm:$0xf]
    %v442 = vunpack.c.l.bf16 %v440
    %v443 = vunpack.c.l.bf16 %v441
    %v444 = vmul.f32 %v435, %v442
    %v445 = vmul.f32 %v438, %v443
    %v446 = vld [vmem:[%s7] sm:$0xff]
    %v447 = vld [vmem:[%s7 + $0x8] sm:$0xff]
    %v448 = vld [vmem:[%s7 + $0x10] sm:$0xff]
    %v449 = vld [vmem:[%s7 + $0x18] sm:$0xff]
    %v451 = vsel %vm146, %v444, 0
    %v454 = vsel %vm146, %v445, 0
    %456 = vmatpush.msra.mxu0 0.0
    %457 = vmatpush.msra.mxu0 0.0
    %458 = vmatpush.msra.mxu0 0.0
    %459 = vmatpush.msra.mxu0 0.0
    %460 = vmatpush.msra.mxu0 0.0
    %461 = vmatpush.msra.mxu0 0.0
    %462 = vmatpush.msra.mxu0 0.0
    %463 = vmatpush.msra.mxu0 0.0
    %464 = vmatpush.msra.mxu0 0.0
    %465 = vmatpush.msra.mxu0 0.0
    %466 = vmatpush.msra.mxu0 0.0
    %467 = vmatpush.msra.mxu0 0.0
    %468 = vmatpush.msra.mxu0 %v449
    %469 = vmatpush.msra.mxu0 %v448
    %470 = vmatpush.msra.mxu0 %v447
    %471 = vmatpush.msra.mxu0 %v446
    %472 = vmatmul.f32.gmra.mxu0 %v451
    %v473 = vpop.f32.mrf.mxu0
    %v474 = vadd.f32 0.0, %v473
    %475 = vmatmul.f32.gmra.mxu0 %v454
    %v476 = vpop.f32.mrf.mxu0
    %v477 = vadd.f32 0.0, %v476
    %478 = vdwg.mxu0
    %v479 = vperm.slane %v405, 0
    %v480 = vadd.f32 %v479, %v474
    %v481 = vadd.f32 %v479, %v477
    %s482 = scalar_lea.vmem [#allocation5], 8
    %v483 = vld [vmem:[%s482] sm:$0xf]
    %v484 = vld [vmem:[%s482 + $0x4] sm:$0xf]
    %v485 = vunpack.c.l.bf16 %v483
    %v486 = vunpack.c.l.bf16 %v484
    %v488 = vsel %vm410, %v485, 0
    %v491 = vsel %vm410, %v486, 0
    %493 = vmatpush.msra.mxu0 0.0
    %494 = vmatpush.msra.mxu0 0.0
    %495 = vmatpush.msra.mxu0 0.0
    %496 = vmatpush.msra.mxu0 0.0
    %497 = vmatpush.msra.mxu0 0.0
    %498 = vmatpush.msra.mxu0 0.0
    %499 = vmatpush.msra.mxu0 0.0
    %500 = vmatpush.msra.mxu0 0.0
    %501 = vmatpush.msra.mxu0 0.0
    %502 = vmatpush.msra.mxu0 0.0
    %503 = vmatpush.msra.mxu0 0.0
    %504 = vmatpush.msra.mxu0 0.0
    %505 = vmatpush.msra.mxu0 0.0
    %506 = vmatpush.msra.mxu0 0.0
    %507 = vmatpush.msra.mxu0 %v404
    %508 = vmatpush.msra.mxu0 %v403
    %509 = vmatmul.f32.gmra.mxu0 %v488
    %v510 = vpop.f32.mrf.mxu0
    %v511 = vadd.f32 0.0, %v510
    %512 = vmatmul.f32.gmra.mxu0 %v491
    %v513 = vpop.f32.mrf.mxu0
    %v514 = vadd.f32 0.0, %v513
    %515 = vdwg.mxu0
    %s516 = scalar_lea.vmem [#allocation7], 8
    %v517 = vld [vmem:[%s516] sm:$0xf]
    %v518 = vld [vmem:[%s516 + $0x4] sm:$0xf]
    %v519 = vunpack.c.l.bf16 %v517
    %v520 = vunpack.c.l.bf16 %v518
    %v521 = vmul.f32 %v511, %v519
    %v522 = vmul.f32 %v514, %v520
    %s523 = scalar_lea.vmem %s7, 32
    %v524 = vld [vmem:[%s523] sm:$0xff]
    %v525 = vld [vmem:[%s523 + $0x8] sm:$0xff]
    %v526 = vld [vmem:[%s523 + $0x10] sm:$0xff]
    %v527 = vld [vmem:[%s523 + $0x18] sm:$0xff]
    %v529 = vsel %vm146, %v521, 0
    %v532 = vsel %vm146, %v522, 0
    %534 = vmatpush.msra.mxu0 0.0
    %535 = vmatpush.msra.mxu0 0.0
    %536 = vmatpush.msra.mxu0 0.0
    %537 = vmatpush.msra.mxu0 0.0
    %538 = vmatpush.msra.mxu0 0.0
    %539 = vmatpush.msra.mxu0 0.0
    %540 = vmatpush.msra.mxu0 0.0
    %541 = vmatpush.msra.mxu0 0.0
    %542 = vmatpush.msra.mxu0 0.0
    %543 = vmatpush.msra.mxu0 0.0
    %544 = vmatpush.msra.mxu0 0.0
    %545 = vmatpush.msra.mxu0 0.0
    %546 = vmatpush.msra.mxu0 %v527
    %547 = vmatpush.msra.mxu0 %v526
    %548 = vmatpush.msra.mxu0 %v525
    %549 = vmatpush.msra.mxu0 %v524
    %550 = vmatmul.f32.gmra.mxu0 %v529
    %v551 = vpop.f32.mrf.mxu0
    %v552 = vadd.f32 0.0, %v551
    %553 = vmatmul.f32.gmra.mxu0 %v532
    %v554 = vpop.f32.mrf.mxu0
    %v555 = vadd.f32 0.0, %v554
    %556 = vdwg.mxu0
    %v557 = vadd.f32 %v480, %v552
    %v558 = vadd.f32 %v481, %v555
    %s559 = scalar_lea.vmem [#allocation5], 16
    %v560 = vld [vmem:[%s559] sm:$0xf]
    %v561 = vld [vmem:[%s559 + $0x4] sm:$0xf]
    %v562 = vunpack.c.l.bf16 %v560
    %v563 = vunpack.c.l.bf16 %v561
    %v565 = vsel %vm410, %v562, 0
    %v568 = vsel %vm410, %v563, 0
    %570 = vmatpush.msra.mxu0 0.0
    %571 = vmatpush.msra.mxu0 0.0
    %572 = vmatpush.msra.mxu0 0.0
    %573 = vmatpush.msra.mxu0 0.0
    %574 = vmatpush.msra.mxu0 0.0
    %575 = vmatpush.msra.mxu0 0.0
    %576 = vmatpush.msra.mxu0 0.0
    %577 = vmatpush.msra.mxu0 0.0
    %578 = vmatpush.msra.mxu0 0.0
    %579 = vmatpush.msra.mxu0 0.0
    %580 = vmatpush.msra.mxu0 0.0
    %581 = vmatpush.msra.mxu0 0.0
    %582 = vmatpush.msra.mxu0 0.0
    %583 = vmatpush.msra.mxu0 0.0
    %584 = vmatpush.msra.mxu0 %v404
    %585 = vmatpush.msra.mxu0 %v403
    %586 = vmatmul.f32.gmra.mxu0 %v565
    %v587 = vpop.f32.mrf.mxu0
    %v588 = vadd.f32 0.0, %v587
    %589 = vmatmul.f32.gmra.mxu0 %v568
    %v590 = vpop.f32.mrf.mxu0
    %v591 = vadd.f32 0.0, %v590
    %592 = vdwg.mxu0
    %s593 = scalar_lea.vmem [#allocation7], 16
    %v594 = vld [vmem:[%s593] sm:$0xf]
    %v595 = vld [vmem:[%s593 + $0x4] sm:$0xf]
    %v596 = vunpack.c.l.bf16 %v594
    %v597 = vunpack.c.l.bf16 %v595
    %v598 = vmul.f32 %v588, %v596
    %v599 = vmul.f32 %v591, %v597
    %s600 = scalar_lea.vmem %s7, 64
    %v601 = vld [vmem:[%s600] sm:$0xff]
    %v602 = vld [vmem:[%s600 + $0x8] sm:$0xff]
    %v603 = vld [vmem:[%s600 + $0x10] sm:$0xff]
    %v604 = vld [vmem:[%s600 + $0x18] sm:$0xff]
    %v606 = vsel %vm146, %v598, 0
    %v609 = vsel %vm146, %v599, 0
    %611 = vmatpush.msra.mxu0 0.0
    %612 = vmatpush.msra.mxu0 0.0
    %613 = vmatpush.msra.mxu0 0.0
    %614 = vmatpush.msra.mxu0 0.0
    %615 = vmatpush.msra.mxu0 0.0
    %616 = vmatpush.msra.mxu0 0.0
    %617 = vmatpush.msra.mxu0 0.0
    %618 = vmatpush.msra.mxu0 0.0
    %619 = vmatpush.msra.mxu0 0.0
    %620 = vmatpush.msra.mxu0 0.0
    %621 = vmatpush.msra.mxu0 0.0
    %622 = vmatpush.msra.mxu0 0.0
    %623 = vmatpush.msra.mxu0 %v604
    %624 = vmatpush.msra.mxu0 %v603
    %625 = vmatpush.msra.mxu0 %v602
    %626 = vmatpush.msra.mxu0 %v601
    %627 = vmatmul.f32.gmra.mxu0 %v606
    %v628 = vpop.f32.mrf.mxu0
    %v629 = vadd.f32 0.0, %v628
    %630 = vmatmul.f32.gmra.mxu0 %v609
    %v631 = vpop.f32.mrf.mxu0
    %v632 = vadd.f32 0.0, %v631
    %633 = vdwg.mxu0
    %v634 = vadd.f32 %v557, %v629
    %v635 = vadd.f32 %v558, %v632
    %s636 = scalar_lea.vmem [#allocation5], 24
    %v637 = vld [vmem:[%s636] sm:$0xf]
    %v638 = vld [vmem:[%s636 + $0x4] sm:$0xf]
    %v639 = vunpack.c.l.bf16 %v637
    %v640 = vunpack.c.l.bf16 %v638
    %v642 = vsel %vm410, %v639, 0
    %v645 = vsel %vm410, %v640, 0
    %647 = vmatpush.msra.mxu0 0.0
    %648 = vmatpush.msra.mxu0 0.0
    %649 = vmatpush.msra.mxu0 0.0
    %650 = vmatpush.msra.mxu0 0.0
    %651 = vmatpush.msra.mxu0 0.0
    %652 = vmatpush.msra.mxu0 0.0
    %653 = vmatpush.msra.mxu0 0.0
    %654 = vmatpush.msra.mxu0 0.0
    %655 = vmatpush.msra.mxu0 0.0
    %656 = vmatpush.msra.mxu0 0.0
    %657 = vmatpush.msra.mxu0 0.0
    %658 = vmatpush.msra.mxu0 0.0
    %659 = vmatpush.msra.mxu0 0.0
    %660 = vmatpush.msra.mxu0 0.0
    %661 = vmatpush.msra.mxu0 %v404
    %662 = vmatpush.msra.mxu0 %v403
    %663 = vmatmul.f32.gmra.mxu0 %v642
    %v664 = vpop.f32.mrf.mxu0
    %v665 = vadd.f32 0.0, %v664
    %666 = vmatmul.f32.gmra.mxu0 %v645
    %v667 = vpop.f32.mrf.mxu0
    %v668 = vadd.f32 0.0, %v667
    %669 = vdwg.mxu0
    %s670 = scalar_lea.vmem [#allocation7], 24
    %v671 = vld [vmem:[%s670] sm:$0xf]
    %v672 = vld [vmem:[%s670 + $0x4] sm:$0xf]
    %v673 = vunpack.c.l.bf16 %v671
    %v674 = vunpack.c.l.bf16 %v672
    %v675 = vmul.f32 %v665, %v673
    %v676 = vmul.f32 %v668, %v674
    %s677 = scalar_lea.vmem %s7, 96
    %v678 = vld [vmem:[%s677] sm:$0xff]
    %v679 = vld [vmem:[%s677 + $0x8] sm:$0xff]
    %v680 = vld [vmem:[%s677 + $0x10] sm:$0xff]
    %v681 = vld [vmem:[%s677 + $0x18] sm:$0xff]
    %v683 = vsel %vm146, %v675, 0
    %v686 = vsel %vm146, %v676, 0
    %688 = vmatpush.msra.mxu0 0.0
    %689 = vmatpush.msra.mxu0 0.0
    %690 = vmatpush.msra.mxu0 0.0
    %691 = vmatpush.msra.mxu0 0.0
    %692 = vmatpush.msra.mxu0 0.0
    %693 = vmatpush.msra.mxu0 0.0
    %694 = vmatpush.msra.mxu0 0.0
    %695 = vmatpush.msra.mxu0 0.0
    %696 = vmatpush.msra.mxu0 0.0
    %697 = vmatpush.msra.mxu0 0.0
    %698 = vmatpush.msra.mxu0 0.0
    %699 = vmatpush.msra.mxu0 0.0
    %700 = vmatpush.msra.mxu0 %v681
    %701 = vmatpush.msra.mxu0 %v680
    %702 = vmatpush.msra.mxu0 %v679
    %703 = vmatpush.msra.mxu0 %v678
    %704 = vmatmul.f32.gmra.mxu0 %v683
    %v705 = vpop.f32.mrf.mxu0
    %v706 = vadd.f32 0.0, %v705
    %707 = vmatmul.f32.gmra.mxu0 %v686
    %v708 = vpop.f32.mrf.mxu0
    %v709 = vadd.f32 0.0, %v708
    %710 = vdwg.mxu0
    %v711 = vadd.f32 %v634, %v706
    %v712 = vadd.f32 %v635, %v709
    %v713 = vadd.f32 %v711, %v132
    %v714 = vadd.f32 %v712, %v133
    %v715 = vsel %vm146, %v713, 0.0
    %716 = vadd.xlane.f32.xlu0 %v715
    %v717 = vpop.xlane.xlu0 %716
    %v718 = vsel %vm146, %v714, 0.0
    %719 = vadd.xlane.f32.xlu0 %v718
    %v720 = vpop.xlane.xlu0 %719
    %v721 = vrcp.pop 32.0
    %v722 = vmul.f32 32.0, %v721
    %v723 = vsub.f32 1.0, %v722
    %v724 = vmul.f32 %v721, %v723
    %v725 = vadd.f32 %v721, %v724
    %vm726 = vweird.f32 %v721
    %v727 = vsel %vm726, %v721, %v725
    %v728 = vmul.f32 %v717, %v727
    %v729 = vmul.f32 %v720, %v727
    %v730 = vsub.f32 %v713, %v728
    %v731 = vsub.f32 %v714, %v729
    %v732 = vmul.f32 %v730, %v730
    %v733 = vmul.f32 %v731, %v731
    %v734 = vsel %vm146, %v732, 0.0
    %735 = vadd.xlane.f32.xlu0 %v734
    %v736 = vpop.xlane.xlu0 %735
    %v737 = vsel %vm146, %v733, 0.0
    %738 = vadd.xlane.f32.xlu0 %v737
    %v739 = vpop.xlane.xlu0 %738
    %v740 = vmul.f32 %v736, %v727
    %v741 = vmul.f32 %v739, %v727
    %v742 = vadd.f32 %v740, 1e-05
    %v743 = vadd.f32 %v741, 1e-05
    %v744 = vrsqrt.pop %v742
    %v745 = vmul.f32 %v744, %v742
    %v746 = vmul.f32 %v745, %v744
    %v747 = vmul.f32 0.5, %v746
    %v748 = vsub.f32 1.5, %v747
    %v749 = vmul.f32 %v744, %v748
    %vm750 = vweird.f32 %v742
    %vm751 = vweird.f32 %v744
    %vm752 = vmor %vm750, %vm751
    %v753 = vsel %vm752, %v744, %v749
    %v754 = vrsqrt.pop %v743
    %v755 = vmul.f32 %v754, %v743
    %v756 = vmul.f32 %v755, %v754
    %v757 = vmul.f32 0.5, %v756
    %v758 = vsub.f32 1.5, %v757
    %v759 = vmul.f32 %v754, %v758
    %vm760 = vweird.f32 %v743
    %vm761 = vweird.f32 %v754
    %vm762 = vmor %vm760, %vm761
    %v763 = vsel %vm762, %v754, %v759
    %v764 = vmul.f32 %v730, %v753
    %v765 = vmul.f32 %v731, %v763
    %v766 = vperm.slane %v405, 1
    %v767 = vmul.f32 %v764, %v766
    %v768 = vmul.f32 %v765, %v766
    %v769 = vperm.slane %v405, 2
    %v770 = vadd.f32 %v767, %v769
    %v771 = vadd.f32 %v768, %v769
    %v772 = vld [vmem:[#allocation8] sm:$0xff]
    %v773 = vld [vmem:[#allocation8 + $0x8] sm:$0xff]
    %v774 = vld [vmem:[#allocation8 + $0x10] sm:$0xff]
    %v775 = vld [vmem:[#allocation8 + $0x18] sm:$0xff]
    %v776 = vld [vmem:[#allocation10] sm:$0x1]
    %v778 = vperm.slane %v776, 0
    %v781 = vsel %vm146, %v770, 0
    %v784 = vsel %vm146, %v771, 0
    %786 = vmatpush.msra.mxu0 0.0
    %787 = vmatpush.msra.mxu0 0.0
    %788 = vmatpush.msra.mxu0 0.0
    %789 = vmatpush.msra.mxu0 0.0
    %790 = vmatpush.msra.mxu0 0.0
    %791 = vmatpush.msra.mxu0 0.0
    %792 = vmatpush.msra.mxu0 0.0
    %793 = vmatpush.msra.mxu0 0.0
    %794 = vmatpush.msra.mxu0 0.0
    %795 = vmatpush.msra.mxu0 0.0
    %796 = vmatpush.msra.mxu0 0.0
    %797 = vmatpush.msra.mxu0 0.0
    %798 = vmatpush.msra.mxu0 %v775
    %799 = vmatpush.msra.mxu0 %v774
    %800 = vmatpush.msra.mxu0 %v773
    %801 = vmatpush.msra.mxu0 %v772
    %802 = vmatmul.f32.gmra.mxu0 %v781
    %v803 = vpop.f32.mrf.mxu0
    %v804 = vadd.f32 %v778, %v803
    %805 = vmatmul.f32.gmra.mxu0 %v784
    %v806 = vpop.f32.mrf.mxu0
    %v807 = vadd.f32 %v778, %v806
    %808 = vdwg.mxu0
    %v809 = vmax.f32 %v804, 0.0
    %v810 = vmax.f32 %v807, 0.0
    %v811 = vld [vmem:[%s10] sm:$0xff]
    %v812 = vld [vmem:[%s10 + $0x8] sm:$0xff]
    %v813 = vld [vmem:[%s10 + $0x10] sm:$0xff]
    %v814 = vld [vmem:[%s10 + $0x18] sm:$0xff]
    %v815 = vld [vmem:[%s10 + $0x20] sm:$0xff]
    %v816 = vld [vmem:[%s10 + $0x28] sm:$0xff]
    %v817 = vld [vmem:[%s10 + $0x30] sm:$0xff]
    %v818 = vld [vmem:[%s10 + $0x38] sm:$0xff]
    %v819 = vld [vmem:[%s10 + $0x40] sm:$0xff]
    %v820 = vld [vmem:[%s10 + $0x48] sm:$0xff]
    %v821 = vld [vmem:[%s10 + $0x50] sm:$0xff]
    %v822 = vld [vmem:[%s10 + $0x58] sm:$0xff]
    %v823 = vld [vmem:[%s10 + $0x60] sm:$0xff]
    %v824 = vld [vmem:[%s10 + $0x68] sm:$0xff]
    %v825 = vld [vmem:[%s10 + $0x70] sm:$0xff]
    %v826 = vld [vmem:[%s10 + $0x78] sm:$0xff]
    %v827 = vperm.slane %v405, 3
    %828 = vmatpush.msra.mxu0 %v826
    %829 = vmatpush.msra.mxu0 %v825
    %830 = vmatpush.msra.mxu0 %v824
    %831 = vmatpush.msra.mxu0 %v823
    %832 = vmatpush.msra.mxu0 %v822
    %833 = vmatpush.msra.mxu0 %v821
    %834 = vmatpush.msra.mxu0 %v820
    %835 = vmatpush.msra.mxu0 %v819
    %836 = vmatpush.msra.mxu0 %v818
    %837 = vmatpush.msra.mxu0 %v817
    %838 = vmatpush.msra.mxu0 %v816
    %839 = vmatpush.msra.mxu0 %v815
    %840 = vmatpush.msra.mxu0 %v814
    %841 = vmatpush.msra.mxu0 %v813
    %842 = vmatpush.msra.mxu0 %v812
    %843 = vmatpush.msra.mxu0 %v811
    %844 = vmatmul.f32.gmra.mxu0 %v809
    %v845 = vpop.f32.mrf.mxu0
    %v846 = vadd.f32 %v827, %v845
    %847 = vmatmul.f32.gmra.mxu0 %v810
    %v848 = vpop.f32.mrf.mxu0
    %v849 = vadd.f32 %v827, %v848
    %850 = vdwg.mxu0
    %v851 = vadd.f32 %v846, %v770
    %v852 = vadd.f32 %v849, %v771
    %v853 = vsel %vm146, %v851, 0.0
    %854 = vadd.xlane.f32.xlu0 %v853
    %v855 = vpop.xlane.xlu0 %854
    %v856 = vsel %vm146, %v852, 0.0
    %857 = vadd.xlane.f32.xlu0 %v856
    %v858 = vpop.xlane.xlu0 %857
    %v859 = vmul.f32 %v855, %v727
    %v860 = vmul.f32 %v858, %v727
    %v861 = vsub.f32 %v851, %v859
    %v862 = vsub.f32 %v852, %v860
    %v863 = vmul.f32 %v861, %v861
    %v864 = vmul.f32 %v862, %v862
    %v865 = vsel %vm146, %v863, 0.0
    %866 = vadd.xlane.f32.xlu0 %v865
    %v867 = vpop.xlane.xlu0 %866
    %v868 = vsel %vm146, %v864, 0.0
    %869 = vadd.xlane.f32.xlu0 %v868
    %v870 = vpop.xlane.xlu0 %869
    %v871 = vmul.f32 %v867, %v727
    %v872 = vmul.f32 %v870, %v727
    %v873 = vadd.f32 %v871, 1e-05
    %v874 = vadd.f32 %v872, 1e-05
    %v875 = vrsqrt.pop %v873
    %v876 = vmul.f32 %v875, %v873
    %v877 = vmul.f32 %v876, %v875
    %v878 = vmul.f32 0.5, %v877
    %v879 = vsub.f32 1.5, %v878
    %v880 = vmul.f32 %v875, %v879
    %vm881 = vweird.f32 %v873
    %vm882 = vweird.f32 %v875
    %vm883 = vmor %vm881, %vm882
    %v884 = vsel %vm883, %v875, %v880
    %v885 = vrsqrt.pop %v874
    %v886 = vmul.f32 %v885, %v874
    %v887 = vmul.f32 %v886, %v885
    %v888 = vmul.f32 0.5, %v887
    %v889 = vsub.f32 1.5, %v888
    %v890 = vmul.f32 %v885, %v889
    %vm891 = vweird.f32 %v874
    %vm892 = vweird.f32 %v885
    %vm893 = vmor %vm891, %vm892
    %v894 = vsel %vm893, %v885, %v890
    %v895 = vmul.f32 %v861, %v884
    %v896 = vmul.f32 %v862, %v894
    %v897 = vperm.slane %v405, 4
    %v898 = vmul.f32 %v895, %v897
    %v899 = vmul.f32 %v896, %v897
    %v900 = vperm.slane %v405, 5
    %v901 = vadd.f32 %v898, %v900
    %v902 = vadd.f32 %v899, %v900
    %903 = vst.msk [vmem:[#allocation13] sm:$0xff] %vm146, %v901
    %904 = vst.msk [vmem:[#allocation13 + $0x8] sm:$0xff] %vm146, %v902
    // Predicated region
    $region74: #{transformer_decoder_block.1} parent=1 // pred_check
      _
    $region75: #{transformer_decoder_block.1} parent=1 // pred_check_branch
      %906 = sbr.rel (0) target = $region77
    $region76: #{transformer_decoder_block.1} parent=1 // pred_region
      %908 = vsyncadd [#allocation4], 0
      %s909 = sshll.u32 [#allocation13], 4
      %s910 = int_to_ptr.vmem [resolvable:$true] %s909
      %s911 = sshll.u32 %s12, 4
      %s912 = int_to_ptr.hbm [resolvable:$true] %s911
      %917 = dma.vmem_to_hbm [thread:$0]  %s910, 256, %s912, [#allocation4], 128, 128, 8
    $region77: #{transformer_decoder_block.1} parent=1 // pred_fallthru
      _
    // Predicated region
    $region78: #{transformer_decoder_block.1} parent=1 // pred_check
      _
    $region79: #{transformer_decoder_block.1} parent=1 // pred_check_branch
      %919 = sbr.rel (0) target = $region81
    $region80: #{transformer_decoder_block.1} parent=1 // pred_region
      %921 = dma.done [#allocation4], 256
    $region81: #{transformer_decoder_block.1} parent=1 // pred_fallthru
      _
    %922 = vsyncpa [#allocation3], 1
    %923 = vsyncpa [#allocation6], 1
    %924 = vsyncpa [#allocation9], 1
    %925 = vsyncpa [#allocation12], 1
    %926 = vsyncpa [#allocation4], 1

</llo_original>
